<compile_context>
chip_gen: v7x
topology: tpu7x:2x2x1
jax: 0.10.0
libtpu: 0.0.40
codegen_flags: <defaults>
</compile_context>

<pallas_src>
import functools

import jax
import jax.numpy as jnp
from jax import lax
from jax.experimental import pallas as pl
from jax.experimental.pallas import tpu as pltpu


def _label_smooth_kernel(x_ref, t_ref, o_ref, m_ref, l_ref, w_ref, *,
                         smoothing, n_rows, n_classes, mask_cols):
    """Online label-smoothed CE over one (tm, tc) logits block.

    Grid = (row_blocks, class_blocks); class axis is the reduction axis.
    Scratch (per row): running max `m_ref`, running sum-exp `l_ref`,
    running weighted-sum `w_ref`, all shaped (tm, 1) f32.
    """
    i = pl.program_id(0)
    j = pl.program_id(1)
    last_j = pl.num_programs(1) - 1

    tm, tc = x_ref.shape

    @pl.when(j == 0)
    def _():
        m_ref[...] = jnp.full(m_ref.shape, -jnp.inf, jnp.float32)
        l_ref[...] = jnp.zeros(l_ref.shape, jnp.float32)
        w_ref[...] = jnp.zeros(w_ref.shape, jnp.float32)

    x = x_ref[...].astype(jnp.float32)                      # (tm, tc)
    t = t_ref[...]                                          # (tm, 1) int32

    # Global class index of every lane in this block.
    col = j * tc + lax.broadcasted_iota(jnp.int32, (tm, tc), 1)

    if mask_cols:                                           # static Python bool
        col_ok = col < n_classes
        x_safe = jnp.where(col_ok, x, -jnp.inf)
    else:
        x_safe = x

    # --- online logsumexp pieces --------------------------------------
    m_prev = m_ref[...]
    m_new = jnp.maximum(m_prev, jnp.max(x_safe, axis=-1, keepdims=True))
    alpha = jnp.exp(m_prev - m_new)                         # 0 on first block
    l_ref[...] = l_ref[...] * alpha + jnp.sum(jnp.exp(x_safe - m_new),
                                              axis=-1, keepdims=True)
    m_ref[...] = m_new

    # --- fused weighted sum:  sum_c w_c * x_c  (weights sum to 1) -----
    off = jnp.float32(smoothing / (n_classes - 1.0))
    on = jnp.float32(1.0 - smoothing)
    wx = jnp.where(col == t, on, off) * x
    if mask_cols:
        wx = jnp.where(col_ok, wx, 0.0)
    w_ref[...] = w_ref[...] + jnp.sum(wx, axis=-1, keepdims=True)

    @pl.when(j == last_j)
    def _():
        lse = m_ref[...] + jnp.log(l_ref[...])              # (tm, 1)
        loss = lse - w_ref[...]                             # (tm, 1) per-row loss
        # Mask padded rows of the last row block (garbage / NaN rows).
        row = i * tm + lax.broadcasted_iota(jnp.int32, (tm, 1), 0)
        loss = jnp.where(row < n_rows, loss, 0.0)
        blk = jnp.sum(loss, axis=0, keepdims=True)          # (1, 1) block sum
        # Lane-dense, unmasked (8, 128) store of the partial sum.
        o_ref[0] = jnp.broadcast_to(blk, (8, 128))


def _round_up(x, m):
    return ((x + m - 1) // m) * m


def _choose_tiles(n, c, in_itemsize, vmem_cap_bytes):
    """Pick (tm, tc, vmem_limit) from a byte budget derived from VMEM size."""
    # Sublane packing granule for the input dtype.
    granule = max(8, 32 // max(1, in_itemsize))             # f32:8 bf16:16 8-bit:32
    if vmem_cap_bytes <= 64 * 2**20:                        # v7x-class (64 MiB / TC)
        input_budget = 4 * 2**20
        vmem_limit = 48 * 2**20
    else:                                                   # v5e / v6e (128 MiB)
        input_budget = 8 * 2**20
        vmem_limit = 96 * 2**20
    vmem_limit = min(vmem_limit, int(vmem_cap_bytes * 0.75))

    # Per (row, class) element: double-buffered input block + ~4 f32 temps
    # (x_f32, exp, weighted product, select mask) that Mosaic materializes.
    per_elem_work = 2 * in_itemsize + 4 * 4
    work_budget = int(vmem_limit * 0.6)

    def rows_for(tc):
        return min(input_budget // (tc * in_itemsize),
                   work_budget // (tc * per_elem_work))

    if rows_for(c) >= granule:
        # Class axis fits whole: one lane-dense block per row tile.
        tc = c
        tm = (rows_for(c) // granule) * granule
    else:
        # Vocab-scale C: split the class axis, keep a healthy row tile.
        tm = 512                                            # multiple of 8/16/32
        tc_max = max(1, min(input_budget // (tm * in_itemsize),
                            work_budget // (tm * per_elem_work)))
        tc = max(128, (tc_max // 128) * 128)
        tc = min(tc, _round_up(c, 128))
    tm = max(granule, min(tm, _round_up(n, granule)))
    return tm, tc, vmem_limit


def label_smooth_loss(logits, targets, *, smoothing=0.0, tm=None, tc=None):
    """logits: (..., C) float (f32/bf16 — feed bf16 from the caller to halve
    HBM traffic); targets: (...,) int in [0, C).  Returns scalar f32 loss."""
    *lead, c = logits.shape
    assert c > 1, "label smoothing needs at least two classes"
    n = 1
    for d in lead:
        n *= d
    x = logits.reshape(n, c)
    t = targets.reshape(n, 1).astype(jnp.int32)

    itemsize = x.dtype.itemsize
    try:
        vmem_cap = int(getattr(pltpu.get_tpu_info(), "vmem_capacity_bytes",
                               64 * 2**20))
    except Exception:                                       # conservative fallback
        vmem_cap = 64 * 2**20
    auto_tm, auto_tc, vmem_limit = _choose_tiles(n, c, itemsize, vmem_cap)
    if tm is None:
        tm = auto_tm
    if tc is None:
        tc = auto_tc

    granule = max(8, 32 // max(1, itemsize))
    assert tm % granule == 0, "row tile must match the dtype's sublane packing"
    assert tc == c or tc % 128 == 0, "class tile must be lane-dense (128) or full"

    grid_r = pl.cdiv(n, tm)
    grid_c = pl.cdiv(c, tc)
    mask_cols = (c % tc) != 0                               # padded last C-block?

    kernel = functools.partial(
        _label_smooth_kernel,
        smoothing=float(smoothing), n_rows=n, n_classes=c, mask_cols=mask_cols)

    # TODO(synk): on v7x, profile that the "parallel" row axis actually spans
    # both TensorCores; if not, switch it to pltpu.CORE_PARALLEL.
    partial_sums = pl.pallas_call(
        kernel,
        out_shape=jax.ShapeDtypeStruct((grid_r, 8, 128), jnp.float32),
        grid_spec=pltpu.PrefetchScalarGridSpec(
            num_scalar_prefetch=0,
            grid=(grid_r, grid_c),
            in_specs=[
                pl.BlockSpec((tm, tc), lambda i, j: (i, j)),
                pl.BlockSpec((tm, 1), lambda i, j: (i, 0)),
            ],
            out_specs=pl.BlockSpec((1, 8, 128), lambda i, j: (i, 0, 0)),
            scratch_shapes=[
                pltpu.VMEM((tm, 1), jnp.float32),   # running max
                pltpu.VMEM((tm, 1), jnp.float32),   # running sum-exp
                pltpu.VMEM((tm, 1), jnp.float32),   # running weighted sum
            ],
        ),
        compiler_params=pltpu.CompilerParams(
            dimension_semantics=("parallel", "arbitrary"),
            vmem_limit_bytes=vmem_limit),
    )(x, t)

    # Finish the mean over exactly N rows (tiny: grid_r values).
    return jnp.sum(partial_sums[:, 0, 0]) / jnp.float32(n)


def _reference(logits, targets, smoothing):
    x = logits.astype(jnp.float32).reshape(-1, logits.shape[-1])
    t = targets.reshape(-1)
    log_prob = jax.nn.log_softmax(x, axis=-1)
    n, c = x.shape
    weight = jnp.full((n, c), smoothing / (c - 1.0), jnp.float32)
    weight = weight.at[jnp.arange(n), t].set(1.0 - smoothing)
    return jnp.mean(jnp.sum(-weight * log_prob, axis=-1))


if __name__ == "__main__":
    key = jax.random.PRNGKey(0)
    k1, k2, k3, k4, k5, k6 = jax.random.split(key, 6)
    smoothing = 0.1

    # Case 1: multi-dim leading batch, auto tiles, class axis kept whole.
    logits1 = jax.random.normal(k1, (4, 8, 128), dtype=jnp.float32)
    targets1 = jax.random.randint(k2, (4, 8), 0, 128, dtype=jnp.int32)
    out1 = jax.block_until_ready(
        label_smooth_loss(logits1, targets1, smoothing=smoothing))
    ref1 = _reference(logits1, targets1, smoothing)
    assert jnp.allclose(out1, ref1, rtol=1e-5, atol=1e-5), (out1, ref1)

    # Case 2: forced tiny tiles to exercise the split-C online-logsumexp path
    # with both padded class columns (320 % 128 != 0) and padded rows.
    logits2 = jax.random.normal(k3, (24, 320), dtype=jnp.float32)
    targets2 = jax.random.randint(k4, (24,), 0, 320, dtype=jnp.int32)
    out2 = jax.block_until_ready(
        label_smooth_loss(logits2, targets2, smoothing=smoothing, tm=16, tc=128))
    ref2 = _reference(logits2, targets2, smoothing)
    assert jnp.allclose(out2, ref2, rtol=1e-5, atol=1e-5), (out2, ref2)

    # Case 3: bf16 logits fed directly (halved HBM read traffic).
    logits3 = jax.random.normal(k5, (16, 256), dtype=jnp.bfloat16)
    targets3 = jax.random.randint(k6, (16,), 0, 256, dtype=jnp.int32)
    out3 = jax.block_until_ready(
        label_smooth_loss(logits3, targets3, smoothing=smoothing))
    ref3 = _reference(logits3, targets3, smoothing)
    assert jnp.allclose(out3, ref3, rtol=1e-4, atol=1e-4), (out3, ref3)

    print("KERNEL_OK")
</pallas_src>

<mosaic_0001>
module attributes {stable_mosaic.version = 11 : i64} {
  func.func @_label_smooth_kernel(%arg0: i32, %arg1: i32, %arg2: memref<32x128xf32, #tpu.memory_space<vmem>>, %arg3: memref<32x1xi32, #tpu.memory_space<vmem>>, %arg4: memref<1x8x128xf32, #tpu.memory_space<vmem>>, %arg5: memref<32x1xf32, #tpu.memory_space<vmem>>, %arg6: memref<32x1xf32, #tpu.memory_space<vmem>>, %arg7: memref<32x1xf32, #tpu.memory_space<vmem>>) attributes {dimension_semantics = [#tpu.dimension_semantics<parallel>, #tpu.dimension_semantics<arbitrary>], iteration_bounds = array<i64: 1, 1>, scalar_prefetch = 0 : i64, scratch_operands = 3 : i64, tpu.core_type = #tpu.core_type<tc>, window_params = [{transform_indices = @transform_0, window_bounds = array<i64: 32, 128>}, {transform_indices = @transform_1, window_bounds = array<i64: 32, 1>}, {transform_indices = @transform_2, window_bounds = array<i64: 1, 8, 128>}]} {
    %c0_i32 = arith.constant 0 : i32
    %0 = arith.cmpi eq, %arg1, %c0_i32 : i32
    %1 = arith.extui %0 : i1 to i32
    %c0_i32_0 = arith.constant 0 : i32
    %2 = arith.cmpi ne, %1, %c0_i32_0 : i32
    scf.if %2 {
      %cst_22 = arith.constant 0xFF800000 : f32
      %39 = vector.broadcast %cst_22 : f32 to vector<32x1xf32>
      %c0_23 = arith.constant 0 : index
      %c0_24 = arith.constant 0 : index
      %40 = vector.load %arg5[%c0_23, %c0_24] : memref<32x1xf32, #tpu.memory_space<vmem>>, vector<32x1xf32>
      tpu.vector_store %arg5[%c0_23, %c0_24], %39 {strides = array<i32>} : memref<32x1xf32, #tpu.memory_space<vmem>>, vector<32x1xf32>,
      %cst_25 = arith.constant 0.000000e+00 : f32
      %41 = vector.broadcast %cst_25 : f32 to vector<32x1xf32>
      %c0_26 = arith.constant 0 : index
      %c0_27 = arith.constant 0 : index
      %42 = vector.load %arg6[%c0_26, %c0_27] : memref<32x1xf32, #tpu.memory_space<vmem>>, vector<32x1xf32>
      tpu.vector_store %arg6[%c0_26, %c0_27], %41 {strides = array<i32>} : memref<32x1xf32, #tpu.memory_space<vmem>>, vector<32x1xf32>,
      %cst_28 = arith.constant 0.000000e+00 : f32
      %43 = vector.broadcast %cst_28 : f32 to vector<32x1xf32>
      %c0_29 = arith.constant 0 : index
      %c0_30 = arith.constant 0 : index
      %44 = vector.load %arg7[%c0_29, %c0_30] : memref<32x1xf32, #tpu.memory_space<vmem>>, vector<32x1xf32>
      tpu.vector_store %arg7[%c0_29, %c0_30], %43 {strides = array<i32>} : memref<32x1xf32, #tpu.memory_space<vmem>>, vector<32x1xf32>,
    } else {
    }
    %c0 = arith.constant 0 : index
    %c0_1 = arith.constant 0 : index
    %3 = vector.load %arg2[%c0, %c0_1] : memref<32x128xf32, #tpu.memory_space<vmem>>, vector<32x128xf32>
    %c0_2 = arith.constant 0 : index
    %c0_3 = arith.constant 0 : index
    %4 = vector.load %arg3[%c0_2, %c0_3] : memref<32x1xi32, #tpu.memory_space<vmem>>, vector<32x1xi32>
    %c128_i32 = arith.constant 128 : i32
    %5 = arith.muli %arg1, %c128_i32 : i32
    %6 = tpu.iota {dimensions = array<i32: 1>} : vector<32x128xi32>
    %7 = vector.broadcast %5 : i32 to vector<32x128xi32>
    %8 = arith.addi %7, %6 : vector<32x128xi32>
    %c0_4 = arith.constant 0 : index
    %c0_5 = arith.constant 0 : index
    %9 = vector.load %arg5[%c0_4, %c0_5] : memref<32x1xf32, #tpu.memory_space<vmem>>, vector<32x1xf32>
    %cst = arith.constant dense<0xFF800000> : vector<32xf32>
    %10 = vector.multi_reduction <maximumf>, %3, %cst [1] : vector<32x128xf32> to vector<32xf32>
    %11 = vector.shape_cast %10 : vector<32xf32> to vector<32x1xf32>
    %12 = arith.maximumf %9, %11 : vector<32x1xf32>
    %13 = arith.subf %9, %12 : vector<32x1xf32>
    %14 = math.exp %13 : vector<32x1xf32>
    %c0_6 = arith.constant 0 : index
    %c0_7 = arith.constant 0 : index
    %15 = vector.load %arg6[%c0_6, %c0_7] : memref<32x1xf32, #tpu.memory_space<vmem>>, vector<32x1xf32>
    %16 = arith.mulf %15, %14 : vector<32x1xf32>
    %17 = vector.broadcast %12 : vector<32x1xf32> to vector<32x128xf32>
    %18 = arith.subf %3, %17 : vector<32x128xf32>
    %19 = math.exp %18 : vector<32x128xf32>
    %cst_8 = arith.constant dense<0.000000e+00> : vector<32xf32>
    %20 = vector.multi_reduction <add>, %19, %cst_8 [1] : vector<32x128xf32> to vector<32xf32>
    %21 = vector.shape_cast %20 : vector<32xf32> to vector<32x1xf32>
    %22 = arith.addf %16, %21 : vector<32x1xf32>
    %c0_9 = arith.constant 0 : index
    %c0_10 = arith.constant 0 : index
    %23 = vector.load %arg6[%c0_9, %c0_10] : memref<32x1xf32, #tpu.memory_space<vmem>>, vector<32x1xf32>
    tpu.vector_store %arg6[%c0_9, %c0_10], %22 {strides = array<i32>} : memref<32x1xf32, #tpu.memory_space<vmem>>, vector<32x1xf32>,
    %c0_11 = arith.constant 0 : index
    %c0_12 = arith.constant 0 : index
    %24 = vector.load %arg5[%c0_11, %c0_12] : memref<32x1xf32, #tpu.memory_space<vmem>>, vector<32x1xf32>
    tpu.vector_store %arg5[%c0_11, %c0_12], %12 {strides = array<i32>} : memref<32x1xf32, #tpu.memory_space<vmem>>, vector<32x1xf32>,
    %25 = vector.broadcast %4 : vector<32x1xi32> to vector<32x128xi32>
    %26 = arith.cmpi eq, %8, %25 : vector<32x128xi32>
    %cst_13 = arith.constant 0.899999976 : f32
    %cst_14 = arith.constant 7.87401571E-4 : f32
    %27 = vector.broadcast %cst_13 : f32 to vector<32x128xf32>
    %28 = vector.broadcast %cst_14 : f32 to vector<32x128xf32>
    %29 = arith.select %26, %27, %28 : vector<32x128xi1>, vector<32x128xf32>
    %30 = arith.mulf %29, %3 : vector<32x128xf32>
    %c0_15 = arith.constant 0 : index
    %c0_16 = arith.constant 0 : index
    %31 = vector.load %arg7[%c0_15, %c0_16] : memref<32x1xf32, #tpu.memory_space<vmem>>, vector<32x1xf32>
    %cst_17 = arith.constant dense<0.000000e+00> : vector<32xf32>
    %32 = vector.multi_reduction <add>, %30, %cst_17 [1] : vector<32x128xf32> to vector<32xf32>
    %33 = vector.shape_cast %32 : vector<32xf32> to vector<32x1xf32>
    %34 = arith.addf %31, %33 : vector<32x1xf32>
    %c0_18 = arith.constant 0 : index
    %c0_19 = arith.constant 0 : index
    %35 = vector.load %arg7[%c0_18, %c0_19] : memref<32x1xf32, #tpu.memory_space<vmem>>, vector<32x1xf32>
    tpu.vector_store %arg7[%c0_18, %c0_19], %34 {strides = array<i32>} : memref<32x1xf32, #tpu.memory_space<vmem>>, vector<32x1xf32>,
    %c0_i32_20 = arith.constant 0 : i32
    %36 = arith.cmpi eq, %arg1, %c0_i32_20 : i32
    %37 = arith.extui %36 : i1 to i32
    %c0_i32_21 = arith.constant 0 : i32
    %38 = arith.cmpi ne, %37, %c0_i32_21 : i32
    scf.if %38 {
      %c0_22 = arith.constant 0 : index
      %c0_23 = arith.constant 0 : index
      %39 = vector.load %arg5[%c0_22, %c0_23] : memref<32x1xf32, #tpu.memory_space<vmem>>, vector<32x1xf32>
      %c0_24 = arith.constant 0 : index
      %c0_25 = arith.constant 0 : index
      %40 = vector.load %arg6[%c0_24, %c0_25] : memref<32x1xf32, #tpu.memory_space<vmem>>, vector<32x1xf32>
      %41 = math.log %40 : vector<32x1xf32>
      %42 = arith.addf %39, %41 : vector<32x1xf32>
      %c0_26 = arith.constant 0 : index
      %c0_27 = arith.constant 0 : index
      %43 = vector.load %arg7[%c0_26, %c0_27] : memref<32x1xf32, #tpu.memory_space<vmem>>, vector<32x1xf32>
      %44 = arith.subf %42, %43 : vector<32x1xf32>
      %c32_i32 = arith.constant 32 : i32
      %45 = arith.muli %arg0, %c32_i32 : i32
      %46 = tpu.iota {dimensions = array<i32: 0>} : vector<32x1xi32>
      %47 = vector.broadcast %45 : i32 to vector<32x1xi32>
      %48 = arith.addi %47, %46 : vector<32x1xi32>
      %c32_i32_28 = arith.constant 32 : i32
      %49 = vector.broadcast %c32_i32_28 : i32 to vector<32x1xi32>
      %50 = arith.cmpi slt, %48, %49 : vector<32x1xi32>
      %cst_29 = arith.constant 0.000000e+00 : f32
      %51 = vector.broadcast %cst_29 : f32 to vector<32x1xf32>
      %52 = arith.select %50, %44, %51 : vector<32x1xi1>, vector<32x1xf32>
      %cst_30 = arith.constant dense<0.000000e+00> : vector<1xf32>
      %53 = vector.multi_reduction <add>, %52, %cst_30 [0] : vector<32x1xf32> to vector<1xf32>
      %54 = vector.shape_cast %53 : vector<1xf32> to vector<1x1xf32>
      %55 = vector.shape_cast %54 : vector<1x1xf32> to vector<1x1xf32>
      %56 = vector.broadcast %55 : vector<1x1xf32> to vector<8x128xf32>
      %c0_31 = arith.constant 0 : index
      %c0_32 = arith.constant 0 : index
      %c0_33 = arith.constant 0 : index
      %57 = vector.load %arg4[%c0_31, %c0_32, %c0_33] : memref<1x8x128xf32, #tpu.memory_space<vmem>>, vector<1x8x128xf32>
      %58 = vector.shape_cast %57 : vector<1x8x128xf32> to vector<8x128xf32>
      %59 = vector.shape_cast %56 : vector<8x128xf32> to vector<1x8x128xf32>
      tpu.vector_store %arg4[%c0_31, %c0_32, %c0_33], %59 {strides = array<i32>} : memref<1x8x128xf32, #tpu.memory_space<vmem>>, vector<1x8x128xf32>,
    } else {
    }
    return
  }
  func.func @transform_0(%arg0: i32, %arg1: i32) -> (i32, i32) {
    %c0_i32 = arith.constant 0 : i32
    return %arg0, %arg1 : i32, i32
  }
  func.func @transform_1(%arg0: i32, %arg1: i32) -> (i32, i32) {
    %c0_i32 = arith.constant 0 : i32
    %c0_i32_0 = arith.constant 0 : i32
    return %arg0, %c0_i32 : i32, i32
  }
  func.func @transform_2(%arg0: i32, %arg1: i32) -> (i32, i32, i32) {
    %c0_i32 = arith.constant 0 : i32
    %c0_i32_0 = arith.constant 0 : i32
    %c0_i32_1 = arith.constant 0 : i32
    return %arg0, %c0_i32, %c0_i32_0 : i32, i32, i32
  }
}

</mosaic_0001>

<llo_original>
// kernel: tpu_custom_call.1
$region0: #{tpu_custom_call.1}
  #allocation0 [shape = 'u32[]', space=smem, size = 0x4, offset = 0x4, fixed_abs, tag = 'smem constant byte address 0x4 - core index']
  #allocation1 [shape = 'u32[144,128]{1,0:T(1,128)}', space=vmem, size = 0x12000, scoped, tag = 'internal scratch']
  #allocation2 [shape = 'f32[32,1]{1,0:T(8,128)}', space=vmem, size = 0x4000, scoped, tag = 'scratch operand']
  #allocation3 [shape = 'f32[32,1]{1,0:T(8,128)}', space=vmem, size = 0x4000, scoped, tag = 'scratch operand']
  #allocation4 [shape = 'f32[32,1]{1,0:T(8,128)}', space=vmem, size = 0x4000, scoped, tag = 'scratch operand']
  %s0 = inlined_call_operand.vmem [shape: f32[32,128], index: 0, kind: input, shape index: {}]
  %s1 = inlined_call_operand.vmem [shape: s32[32,1], index: 1, kind: input, shape index: {}]
  %s2 = inlined_call_operand.hbm [shape: f32[1,8,128], index: 2, kind: output, shape index: {}]
  %s3 = sld [smem:[#allocation0]]
  $region26: #{tpu_custom_call.1} parent=0
    _
  %s5 = ssub.s32 1, %s3
  %s6 = scalar_select 0, %s5, %s3
  $region1: #{tpu_custom_call.1} parent=0
    #allocation5 [shape = 'u8[4096]{0}', space=vmem, size = 0x1000, scoped, tag = 'output window, operand 0, single buffered']
    #allocation6 [shape = 's32[1]{0}', space=sflag, size = 0x4, scoped, tag = 'scoped memory for tpu_custom_call.1']
    %7 = vsyncpa [#allocation6], 0
    // Predicated region
    $region2: #{tpu_custom_call.1} parent=1 // pred_check
      _
    $region3: #{tpu_custom_call.1} parent=1 // pred_check_branch
      %9 = sbr.rel (0) target = $region5
    $region4: #{tpu_custom_call.1} parent=1 // pred_region
      _
    $region5: #{tpu_custom_call.1} parent=1 // pred_fallthru
      _
    // Predicated region
    $region6: #{tpu_custom_call.1} parent=1 // pred_check
      _
    $region7: #{tpu_custom_call.1} parent=1 // pred_check_branch
      %11 = sbr.rel (0) target = $region9
    $region8: #{tpu_custom_call.1} parent=1 // pred_region
      _
    $region9: #{tpu_custom_call.1} parent=1 // pred_fallthru
      _
    %p12 = scmp.eq.s32.totalorder 0, 0
    // Predicated region
    $region10: #{tpu_custom_call.1} parent=1 // pred_check
      %p13 = pneg %p12
    $region11: #{tpu_custom_call.1} parent=1 // pred_check_branch
      %15 = sbr.rel (%p13) target = $region13
    $region12: #{tpu_custom_call.1} parent=1 // pred_region
      %vm16 = vcmask 7168
      %17 = vst.msk [vmem:[#allocation2] sm:$0xff] %vm16, -inf
      %18 = vst.msk [vmem:[#allocation2 + $0x8] sm:$0xff] %vm16, -inf
      %19 = vst.msk [vmem:[#allocation2 + $0x10] sm:$0xff] %vm16, -inf
      %20 = vst.msk [vmem:[#allocation2 + $0x18] sm:$0xff] %vm16, -inf
      %21 = vst.msk [vmem:[#allocation3] sm:$0xff] %vm16, 0.0
      %22 = vst.msk [vmem:[#allocation3 + $0x8] sm:$0xff] %vm16, 0.0
      %23 = vst.msk [vmem:[#allocation3 + $0x10] sm:$0xff] %vm16, 0.0
      %24 = vst.msk [vmem:[#allocation3 + $0x18] sm:$0xff] %vm16, 0.0
      %25 = vst.msk [vmem:[#allocation4] sm:$0xff] %vm16, 0.0
      %26 = vst.msk [vmem:[#allocation4 + $0x8] sm:$0xff] %vm16, 0.0
      %27 = vst.msk [vmem:[#allocation4 + $0x10] sm:$0xff] %vm16, 0.0
      %28 = vst.msk [vmem:[#allocation4 + $0x18] sm:$0xff] %vm16, 0.0
    $region13: #{tpu_custom_call.1} parent=1 // pred_fallthru
      _
    %v29 = vld [vmem:[%s0] sm:$0xff]
    %v30 = vld [vmem:[%s0 + $0x8] sm:$0xff]
    %v31 = vld [vmem:[%s0 + $0x10] sm:$0xff]
    %v32 = vld [vmem:[%s0 + $0x18] sm:$0xff]
    %v33 = vld [vmem:[%s1] sm:$0xff]
    %v34 = vld [vmem:[%s1 + $0x8] sm:$0xff]
    %v35 = vld [vmem:[%s1 + $0x10] sm:$0xff]
    %v36 = vld [vmem:[%s1 + $0x18] sm:$0xff]
    %s37 = smul.u32 0, 128
    %v38 = vlaneseq
    %v39 = vand.u32 %v38, 127
    %v40 = vstv %s37
    %v41 = vadd.s32 %v40, %v39
    %v42 = vld [vmem:[#allocation2] sm:$0xff]
    %v43 = vld [vmem:[#allocation2 + $0x8] sm:$0xff]
    %v44 = vld [vmem:[#allocation2 + $0x10] sm:$0xff]
    %v45 = vld [vmem:[#allocation2 + $0x18] sm:$0xff]
    %46 = vmax.xlane.f32.xlu0 %v29
    %v47 = vpop.xlane.xlu0 %46
    %48 = vmax.xlane.f32.xlu0 %v30
    %v49 = vpop.xlane.xlu0 %48
    %50 = vmax.xlane.f32.xlu0 %v31
    %v51 = vpop.xlane.xlu0 %50
    %52 = vmax.xlane.f32.xlu0 %v32
    %v53 = vpop.xlane.xlu0 %52
    %v54 = vmax.f32 %v42, %v47
    %v55 = vmax.f32 %v43, %v49
    %v56 = vmax.f32 %v44, %v51
    %v57 = vmax.f32 %v45, %v53
    %v58 = vsub.f32 %v42, %v54
    %v59 = vsub.f32 %v43, %v55
    %v60 = vsub.f32 %v44, %v56
    %v61 = vsub.f32 %v45, %v57
    %v62 = vmul.f32 %v58, 1.442695
    %v63 = vpow.pop %v62
    %v64 = vmul.f32 %v59, 1.442695
    %v65 = vpow.pop %v64
    %v66 = vmul.f32 %v60, 1.442695
    %v67 = vpow.pop %v66
    %v68 = vmul.f32 %v61, 1.442695
    %v69 = vpow.pop %v68
    %v70 = vld [vmem:[#allocation3] sm:$0xff]
    %v71 = vld [vmem:[#allocation3 + $0x8] sm:$0xff]
    %v72 = vld [vmem:[#allocation3 + $0x10] sm:$0xff]
    %v73 = vld [vmem:[#allocation3 + $0x18] sm:$0xff]
    %v74 = vmul.f32 %v70, %v63
    %v75 = vmul.f32 %v71, %v65
    %v76 = vmul.f32 %v72, %v67
    %v77 = vmul.f32 %v73, %v69
    %79 = vset.pattern.permute.xlu0 0
    %80 = vperm.xlu0 %79, %v54
    %v81 = vpop.permute.xlu0 %80
    %84 = vset.pattern.permute.xlu0 0
    %85 = vperm.xlu0 %84, %v55
    %v86 = vpop.permute.xlu0 %85
    %89 = vset.pattern.permute.xlu0 0
    %90 = vperm.xlu0 %89, %v56
    %v91 = vpop.permute.xlu0 %90
    %94 = vset.pattern.permute.xlu0 0
    %95 = vperm.xlu0 %94, %v57
    %v96 = vpop.permute.xlu0 %95
    %v98 = vsub.f32 %v29, %v81
    %v99 = vsub.f32 %v30, %v86
    %v100 = vsub.f32 %v31, %v91
    %v101 = vsub.f32 %v32, %v96
    %v102 = vmul.f32 %v98, 1.442695
    %v103 = vpow.pop %v102
    %v104 = vmul.f32 %v99, 1.442695
    %v105 = vpow.pop %v104
    %v106 = vmul.f32 %v100, 1.442695
    %v107 = vpow.pop %v106
    %v108 = vmul.f32 %v101, 1.442695
    %v109 = vpow.pop %v108
    %110 = vadd.xlane.f32.xlu0 %v103
    %v111 = vpop.xlane.xlu0 %110
    %112 = vadd.xlane.f32.xlu0 %v105
    %v113 = vpop.xlane.xlu0 %112
    %114 = vadd.xlane.f32.xlu0 %v107
    %v115 = vpop.xlane.xlu0 %114
    %116 = vadd.xlane.f32.xlu0 %v109
    %v117 = vpop.xlane.xlu0 %116
    %v118 = vadd.f32 %v74, %v111
    %v119 = vadd.f32 %v75, %v113
    %v120 = vadd.f32 %v76, %v115
    %v121 = vadd.f32 %v77, %v117
    %vm122 = vcmask 7168
    %123 = vst.msk [vmem:[#allocation3] sm:$0xff] %vm122, %v118
    %124 = vst.msk [vmem:[#allocation3 + $0x8] sm:$0xff] %vm122, %v119
    %125 = vst.msk [vmem:[#allocation3 + $0x10] sm:$0xff] %vm122, %v120
    %126 = vst.msk [vmem:[#allocation3 + $0x18] sm:$0xff] %vm122, %v121
    %127 = vst.msk [vmem:[#allocation2] sm:$0xff] %vm122, %v54
    %128 = vst.msk [vmem:[#allocation2 + $0x8] sm:$0xff] %vm122, %v55
    %129 = vst.msk [vmem:[#allocation2 + $0x10] sm:$0xff] %vm122, %v56
    %130 = vst.msk [vmem:[#allocation2 + $0x18] sm:$0xff] %vm122, %v57
    %131 = vset.pattern.permute.xlu0 0
    %132 = vperm.xlu0 %131, %v33
    %v133 = vpop.permute.xlu0 %132
    %134 = vset.pattern.permute.xlu0 0
    %135 = vperm.xlu0 %134, %v34
    %v136 = vpop.permute.xlu0 %135
    %137 = vset.pattern.permute.xlu0 0
    %138 = vperm.xlu0 %137, %v35
    %v139 = vpop.permute.xlu0 %138
    %140 = vset.pattern.permute.xlu0 0
    %141 = vperm.xlu0 %140, %v36
    %v142 = vpop.permute.xlu0 %141
    %vm143 = vcmp.eq.s32.totalorder %v41, %v133
    %vm144 = vcmp.eq.s32.totalorder %v41, %v136
    %vm145 = vcmp.eq.s32.totalorder %v41, %v139
    %vm146 = vcmp.eq.s32.totalorder %v41, %v142
    %v147 = vsel %vm143, 0.9, 0.0007874016
    %v148 = vsel %vm144, 0.9, 0.0007874016
    %v149 = vsel %vm145, 0.9, 0.0007874016
    %v150 = vsel %vm146, 0.9, 0.0007874016
    %v151 = vmul.f32 %v147, %v29
    %v152 = vmul.f32 %v148, %v30
    %v153 = vmul.f32 %v149, %v31
    %v154 = vmul.f32 %v150, %v32
    %v155 = vld [vmem:[#allocation4] sm:$0xff]
    %v156 = vld [vmem:[#allocation4 + $0x8] sm:$0xff]
    %v157 = vld [vmem:[#allocation4 + $0x10] sm:$0xff]
    %v158 = vld [vmem:[#allocation4 + $0x18] sm:$0xff]
    %159 = vadd.xlane.f32.xlu0 %v151
    %v160 = vpop.xlane.xlu0 %159
    %161 = vadd.xlane.f32.xlu0 %v152
    %v162 = vpop.xlane.xlu0 %161
    %163 = vadd.xlane.f32.xlu0 %v153
    %v164 = vpop.xlane.xlu0 %163
    %165 = vadd.xlane.f32.xlu0 %v154
    %v166 = vpop.xlane.xlu0 %165
    %v167 = vadd.f32 %v155, %v160
    %v168 = vadd.f32 %v156, %v162
    %v169 = vadd.f32 %v157, %v164
    %v170 = vadd.f32 %v158, %v166
    %171 = vst.msk [vmem:[#allocation4] sm:$0xff] %vm122, %v167
    %172 = vst.msk [vmem:[#allocation4 + $0x8] sm:$0xff] %vm122, %v168
    %173 = vst.msk [vmem:[#allocation4 + $0x10] sm:$0xff] %vm122, %v169
    %174 = vst.msk [vmem:[#allocation4 + $0x18] sm:$0xff] %vm122, %v170
    // Predicated region
    $region14: #{tpu_custom_call.1} parent=1 // pred_check
      %p175 = pneg %p12
    $region15: #{tpu_custom_call.1} parent=1 // pred_check_branch
      %177 = sbr.rel (%p175) target = $region17
    $region16: #{tpu_custom_call.1} parent=1 // pred_region
      %v178 = vld [vmem:[#allocation2] sm:$0xff]
      %v179 = vld [vmem:[#allocation2 + $0x8] sm:$0xff]
      %v180 = vld [vmem:[#allocation2 + $0x10] sm:$0xff]
      %v181 = vld [vmem:[#allocation2 + $0x18] sm:$0xff]
      %v182 = vld [vmem:[#allocation3] sm:$0xff]
      %v183 = vld [vmem:[#allocation3 + $0x8] sm:$0xff]
      %v184 = vld [vmem:[#allocation3 + $0x10] sm:$0xff]
      %v185 = vld [vmem:[#allocation3 + $0x18] sm:$0xff]
      %v186 = vlog2.pop %v182
      %v187 = vmul.f32 %v186, 0.6931472
      %v188 = vlog2.pop %v183
      %v189 = vmul.f32 %v188, 0.6931472
      %v190 = vlog2.pop %v184
      %v191 = vmul.f32 %v190, 0.6931472
      %v192 = vlog2.pop %v185
      %v193 = vmul.f32 %v192, 0.6931472
      %v194 = vadd.f32 %v178, %v187
      %v195 = vadd.f32 %v179, %v189
      %v196 = vadd.f32 %v180, %v191
      %v197 = vadd.f32 %v181, %v193
      %v198 = vld [vmem:[#allocation4] sm:$0xff]
      %v199 = vld [vmem:[#allocation4 + $0x8] sm:$0xff]
      %v200 = vld [vmem:[#allocation4 + $0x10] sm:$0xff]
      %v201 = vld [vmem:[#allocation4 + $0x18] sm:$0xff]
      %v202 = vsub.f32 %v194, %v198
      %v203 = vsub.f32 %v195, %v199
      %v204 = vsub.f32 %v196, %v200
      %v205 = vsub.f32 %v197, %v201
      %s206 = smul.u32 0, 32
      %v207 = vlaneseq
      %v208 = vshrl.u32 %v207, 7
      %v209 = vadd.s32 %v208, 8
      %v210 = vadd.s32 %v208, 16
      %v211 = vadd.s32 %v208, 24
      %v212 = vstv %s206
      %v213 = vadd.s32 %v212, %v208
      %v214 = vadd.s32 %v212, %v209
      %v215 = vadd.s32 %v212, %v210
      %v216 = vadd.s32 %v212, %v211
      %vm217 = vcmp.lt.s32.totalorder %v213, 32
      %vm218 = vcmp.lt.s32.totalorder %v214, 32
      %vm219 = vcmp.lt.s32.totalorder %v215, 32
      %vm220 = vcmp.lt.s32.totalorder %v216, 32
      %v221 = vsel %vm217, %v202, 0.0
      %v222 = vsel %vm218, %v203, 0.0
      %v223 = vsel %vm219, %v204, 0.0
      %v224 = vsel %vm220, %v205, 0.0
      %v225 = vsel %vm122, %v221, 0.0
      %v226 = vsel %vm122, %v222, 0.0
      %v227 = vadd.f32 %v225, %v226
      %v228 = vsel %vm122, %v223, 0.0
      %v229 = vadd.f32 %v227, %v228
      %v230 = vsel %vm122, %v224, 0.0
      %v231 = vadd.f32 %v229, %v230
      %v232 = vrot.slane %v231, 4
      %v233 = vadd.f32 %v231, %v232
      %v234 = vrot.slane %v233, 2
      %v235 = vadd.f32 %v233, %v234
      %v236 = vrot.slane %v235, 1
      %v237 = vadd.f32 %v235, %v236
      %239 = vset.pattern.permute.xlu0 0
      %240 = vperm.xlu0 %239, %v237
      %v241 = vpop.permute.xlu0 %240
      %243 = vst [vmem:[#allocation5] sm:$0xff] %v241
    $region17: #{tpu_custom_call.1} parent=1 // pred_fallthru
      _
    // Predicated region
    $region18: #{tpu_custom_call.1} parent=1 // pred_check
      _
    $region19: #{tpu_custom_call.1} parent=1 // pred_check_branch
      %245 = sbr.rel (0) target = $region21
    $region20: #{tpu_custom_call.1} parent=1 // pred_region
      %s247 = ssub.s32 128, 128
      %248 = vsyncadd [#allocation6], %s247
      %s250 = sshll.u32 [#allocation5], 4
      %s251 = int_to_ptr.vmem [resolvable:$true] %s250
      %253 = dma.vmem_to_hbm [thread:$0]  %s251, 128, %s2, [#allocation6]
    $region21: #{tpu_custom_call.1} parent=1 // pred_fallthru
      _
    // Predicated region
    $region22: #{tpu_custom_call.1} parent=1 // pred_check
      _
    $region23: #{tpu_custom_call.1} parent=1 // pred_check_branch
      %255 = sbr.rel (0) target = $region25
    $region24: #{tpu_custom_call.1} parent=1 // pred_region
      %256 = dma.done [#allocation6], 128
    $region25: #{tpu_custom_call.1} parent=1 // pred_fallthru
      _
    %257 = vsyncpa [#allocation6], 1

</llo_original>
